<compile_context>
chip_gen: v7x
topology: tpu7x:2x2x1
jax: 0.10.0
libtpu: 0.0.40
codegen_flags: <defaults>
</compile_context>

<pallas_src>
import functools

import jax
import jax.numpy as jnp
from jax import lax
from jax.experimental import pallas as pl
from jax.experimental.pallas import tpu as pltpu


def _round_up(a, m):
    return -(-a // m) * m


def _vmem_budget_bytes():
    """(input tile budget, explicit vmem_limit_bytes) — generation aware."""
    capacity = 128 * 1024 * 1024                      # conservative default
    try:
        capacity = pltpu.get_tpu_info().vmem_capacity_bytes
    except Exception:
        pass
    # ~24 MiB of double-buffered input tiles on 128 MiB parts (v5e/v6e),
    # ~21 MiB on v7x's 64 MiB/TC.  vmem_limit leaves slack for outputs/spills.
    input_budget = min(24 * 1024 * 1024, capacity // 3)
    vmem_limit = min(capacity - capacity // 4, input_budget + 8 * 1024 * 1024)
    return int(input_budget), int(vmem_limit)


def _finish(sx, sy, o_ref, *, c, eps):
    """Normalize per-row channel sum-of-squares and emit this tile's partial."""
    # per-row squared L2 norm over the flattened spatial axis -> (TB, 1)
    nx2 = jnp.sum(sx * sx, axis=1, keepdims=True)
    ny2 = jnp.sum(sy * sy, axis=1, keepdims=True)
    # F.normalize(s/C) == s / max(||s||, C*eps)   (scale invariance of L2 norm).
    ce2 = jnp.float32((c * eps) * (c * eps))
    inv_nx = lax.rsqrt(jnp.maximum(nx2, ce2))         # fused sqrt + reciprocal
    inv_ny = lax.rsqrt(jnp.maximum(ny2, ce2))
    d = sx * inv_nx - sy * inv_ny                     # (TB, HW)
    partial = jnp.sum(d * d)
    # Lane-dense, unmasked full-block store of the scalar partial.
    o_ref[...] = jnp.full(o_ref.shape, partial, dtype=o_ref.dtype)


def _rc_loss_kernel_2d(x_ref, y_ref, o_ref, *, c, hw, eps):
    # x_ref, y_ref: (TB, C*HW) in native dtype.  Channel reduction as C static,
    # lane-aligned slices (HW % 128 == 0 on this path); cast per slice so HBM
    # traffic stays native-width and live vregs stay bounded.
    tb = x_ref.shape[0]
    sx = jnp.zeros((tb, hw), jnp.float32)
    sy = jnp.zeros((tb, hw), jnp.float32)
    for k in range(c):
        xk = x_ref[:, k * hw:(k + 1) * hw].astype(jnp.float32)
        yk = y_ref[:, k * hw:(k + 1) * hw].astype(jnp.float32)
        sx = sx + xk * xk
        sy = sy + yk * yk
    _finish(sx, sy, o_ref, c=c, eps=eps)


def _rc_loss_kernel_3d(x_ref, y_ref, o_ref, *, c, eps):
    # x_ref, y_ref: (TB, C, HW) in native dtype (C a multiple of the sublane
    # pack, or the correctness fallback).  Plain sublane reduce over channels.
    x = x_ref[...].astype(jnp.float32)
    y = y_ref[...].astype(jnp.float32)
    sx = jnp.sum(x * x, axis=1)                       # (TB, HW)
    sy = jnp.sum(y * y, axis=1)
    _finish(sx, sy, o_ref, c=c, eps=eps)


def rc_loss(x, y, *, eps=1e-12, tile_b=None):
    """Pallas implementation of RCLoss.forward(x, y) -> scalar f32."""
    assert x.shape == y.shape and x.ndim >= 2
    b, c = x.shape[0], x.shape[1]
    hw = 1
    for s in x.shape[2:]:
        hw *= s

    itemsize = jnp.dtype(x.dtype).itemsize
    sub = 8 if itemsize >= 4 else (16 if itemsize == 2 else 32)   # sublane pack

    input_budget, vmem_limit = _vmem_budget_bytes()

    # Layout choice: 2D lane-dense when C would waste sublane padding.
    use_2d = (c % sub != 0) and (hw % 128 == 0)
    if use_2d:
        chw = c * hw
        row_bytes = _round_up(chw, 128) * itemsize            # 1 input, 1 buffer
        extra_f32 = 2 * hw * 4                                 # sx/sy accumulators
    else:
        padded = _round_up(c, sub) * _round_up(hw, 128)
        row_bytes = padded * itemsize
        extra_f32 = 2 * padded * 4 + 2 * hw * 4                # f32 squares + accs
    per_row = 4 * row_bytes + extra_f32                        # 2 inputs x 2 buffers

    if tile_b is None:
        tb = max(1, input_budget // max(per_row, 1))
        tb = min(tb, b)
        if tb >= b:
            if b >= 4 * sub:
                # Split into >=2 tiles so both v7x TensorCores get work
                # ("parallel" grid axis); negligible cost on 1-TC chips.
                tb = _round_up(-(-b // 2), sub)
            else:
                tb = b                                         # single full tile
        elif use_2d:
            # 2D block's second-to-minor dim must be a multiple of the pack
            # (or equal the full array dim) — round to the pack.
            tb = max(sub, (tb // sub) * sub)
    else:
        tb = min(tile_b, b)

    num_tiles = -(-b // tb)
    b_pad = num_tiles * tb

    if use_2d:
        ax = x.reshape(b, c * hw)
        ay = y.reshape(b, c * hw)
        in_spec = pl.BlockSpec((tb, c * hw), lambda i: (i, 0))
        kernel = functools.partial(_rc_loss_kernel_2d, c=c, hw=hw, eps=float(eps))
    else:
        ax = x.reshape(b, c, hw)
        ay = y.reshape(b, c, hw)
        in_spec = pl.BlockSpec((tb, c, hw), lambda i: (i, 0, 0))
        kernel = functools.partial(_rc_loss_kernel_3d, c=c, eps=float(eps))

    if b_pad != b:
        # Zero rows normalize to exactly 0 and contribute 0 to the loss sum.
        pad_cfg = [(0, b_pad - b)] + [(0, 0)] * (ax.ndim - 1)
        ax = jnp.pad(ax, pad_cfg)
        ay = jnp.pad(ay, pad_cfg)

    partials = pl.pallas_call(
        kernel,
        out_shape=jax.ShapeDtypeStruct((num_tiles, 8, 128), jnp.float32),
        grid_spec=pltpu.PrefetchScalarGridSpec(
            num_scalar_prefetch=0,
            grid=(num_tiles,),
            in_specs=[in_spec, in_spec],
            out_specs=pl.BlockSpec((1, 8, 128), lambda i: (i, 0, 0)),
        ),
        compiler_params=pltpu.CompilerParams(
            # NOTE: consider pltpu.CORE_PARALLEL on v7x if profiling shows the
            # grid is not actually sharded across the two TensorCores.
            dimension_semantics=("parallel",),
            vmem_limit_bytes=vmem_limit,
        ),
    )(ax, ay)

    # One scalar per tile lives in lane 0 / sublane 0 of its block.
    return jnp.sum(partials[:, 0, 0]) / (b * hw)


def _reference(x, y, eps=1e-12):
    """Pure-JAX transcription of the PyTorch RCLoss module."""
    def rc(v):
        s = jnp.mean(v.astype(jnp.float32) ** 2, axis=1).reshape(v.shape[0], -1)
        n = jnp.sqrt(jnp.sum(s * s, axis=1, keepdims=True))
        return s / jnp.maximum(n, eps)

    d = rc(x) - rc(y)
    return jnp.mean(d * d)


if __name__ == "__main__":
    key = jax.random.PRNGKey(0)
    k1, k2 = jax.random.split(key)
    x = jax.random.normal(k1, (2, 4, 16, 16), dtype=jnp.float32)
    y = jax.random.normal(k2, (2, 4, 16, 16), dtype=jnp.float32)

    loss = rc_loss(x, y)
    jax.block_until_ready(loss)

    ref = _reference(x, y)
    assert jnp.allclose(loss, ref, rtol=1e-4, atol=1e-7), (loss, ref)

    print("KERNEL_OK")
</pallas_src>

<mosaic_0001>
module attributes {stable_mosaic.version = 11 : i64} {
  func.func @_rc_loss_kernel_2d(%arg0: i32, %arg1: memref<2x1024xf32, #tpu.memory_space<vmem>>, %arg2: memref<2x1024xf32, #tpu.memory_space<vmem>>, %arg3: memref<1x8x128xf32, #tpu.memory_space<vmem>>) attributes {dimension_semantics = [#tpu.dimension_semantics<parallel>], iteration_bounds = array<i64: 1>, scalar_prefetch = 0 : i64, scratch_operands = 0 : i64, tpu.core_type = #tpu.core_type<tc>, window_params = [{transform_indices = @transform_0, window_bounds = array<i64: 2, 1024>}, {transform_indices = @transform_1, window_bounds = array<i64: 2, 1024>}, {transform_indices = @transform_2, window_bounds = array<i64: 1, 8, 128>}]} {
    %cst = arith.constant 0.000000e+00 : f32
    %0 = vector.broadcast %cst : f32 to vector<2x256xf32>
    %cst_0 = arith.constant 0.000000e+00 : f32
    %1 = vector.broadcast %cst_0 : f32 to vector<2x256xf32>
    %c0 = arith.constant 0 : index
    %c0_1 = arith.constant 0 : index
    %2 = vector.load %arg1[%c0, %c0_1] : memref<2x1024xf32, #tpu.memory_space<vmem>>, vector<2x256xf32>
    %c0_2 = arith.constant 0 : index
    %c0_3 = arith.constant 0 : index
    %3 = vector.load %arg2[%c0_2, %c0_3] : memref<2x1024xf32, #tpu.memory_space<vmem>>, vector<2x256xf32>
    %4 = arith.mulf %2, %2 : vector<2x256xf32>
    %5 = arith.addf %0, %4 : vector<2x256xf32>
    %6 = arith.mulf %3, %3 : vector<2x256xf32>
    %7 = arith.addf %1, %6 : vector<2x256xf32>
    %c0_4 = arith.constant 0 : index
    %c256 = arith.constant 256 : index
    %8 = vector.load %arg1[%c0_4, %c256] : memref<2x1024xf32, #tpu.memory_space<vmem>>, vector<2x256xf32>
    %c0_5 = arith.constant 0 : index
    %c256_6 = arith.constant 256 : index
    %9 = vector.load %arg2[%c0_5, %c256_6] : memref<2x1024xf32, #tpu.memory_space<vmem>>, vector<2x256xf32>
    %10 = arith.mulf %8, %8 : vector<2x256xf32>
    %11 = arith.addf %5, %10 : vector<2x256xf32>
    %12 = arith.mulf %9, %9 : vector<2x256xf32>
    %13 = arith.addf %7, %12 : vector<2x256xf32>
    %c0_7 = arith.constant 0 : index
    %c512 = arith.constant 512 : index
    %14 = vector.load %arg1[%c0_7, %c512] : memref<2x1024xf32, #tpu.memory_space<vmem>>, vector<2x256xf32>
    %c0_8 = arith.constant 0 : index
    %c512_9 = arith.constant 512 : index
    %15 = vector.load %arg2[%c0_8, %c512_9] : memref<2x1024xf32, #tpu.memory_space<vmem>>, vector<2x256xf32>
    %16 = arith.mulf %14, %14 : vector<2x256xf32>
    %17 = arith.addf %11, %16 : vector<2x256xf32>
    %18 = arith.mulf %15, %15 : vector<2x256xf32>
    %19 = arith.addf %13, %18 : vector<2x256xf32>
    %c0_10 = arith.constant 0 : index
    %c768 = arith.constant 768 : index
    %20 = vector.load %arg1[%c0_10, %c768] : memref<2x1024xf32, #tpu.memory_space<vmem>>, vector<2x256xf32>
    %c0_11 = arith.constant 0 : index
    %c768_12 = arith.constant 768 : index
    %21 = vector.load %arg2[%c0_11, %c768_12] : memref<2x1024xf32, #tpu.memory_space<vmem>>, vector<2x256xf32>
    %22 = arith.mulf %20, %20 : vector<2x256xf32>
    %23 = arith.addf %17, %22 : vector<2x256xf32>
    %24 = arith.mulf %21, %21 : vector<2x256xf32>
    %25 = arith.addf %19, %24 : vector<2x256xf32>
    %26 = arith.mulf %23, %23 : vector<2x256xf32>
    %cst_13 = arith.constant dense<0.000000e+00> : vector<2xf32>
    %27 = vector.multi_reduction <add>, %26, %cst_13 [1] : vector<2x256xf32> to vector<2xf32>
    %28 = vector.shape_cast %27 : vector<2xf32> to vector<2x1xf32>
    %29 = arith.mulf %25, %25 : vector<2x256xf32>
    %cst_14 = arith.constant dense<0.000000e+00> : vector<2xf32>
    %30 = vector.multi_reduction <add>, %29, %cst_14 [1] : vector<2x256xf32> to vector<2xf32>
    %31 = vector.shape_cast %30 : vector<2xf32> to vector<2x1xf32>
    %cst_15 = arith.constant 1.600000e-23 : f32
    %32 = vector.broadcast %cst_15 : f32 to vector<2x1xf32>
    %33 = arith.maximumf %28, %32 : vector<2x1xf32>
    %34 = math.rsqrt %33 : vector<2x1xf32>
    %cst_16 = arith.constant 1.600000e-23 : f32
    %35 = vector.broadcast %cst_16 : f32 to vector<2x1xf32>
    %36 = arith.maximumf %31, %35 : vector<2x1xf32>
    %37 = math.rsqrt %36 : vector<2x1xf32>
    %38 = vector.broadcast %34 : vector<2x1xf32> to vector<2x256xf32>
    %39 = arith.mulf %23, %38 : vector<2x256xf32>
    %40 = vector.broadcast %37 : vector<2x1xf32> to vector<2x256xf32>
    %41 = arith.mulf %25, %40 : vector<2x256xf32>
    %42 = arith.subf %39, %41 : vector<2x256xf32>
    %43 = arith.mulf %42, %42 : vector<2x256xf32>
    %44 = vector.shape_cast %43 : vector<2x256xf32> to vector<1x2x256xf32>
    %cst_17 = arith.constant dense<0.000000e+00> : vector<1xf32>
    %45 = vector.multi_reduction <add>, %44, %cst_17 [1, 2] : vector<1x2x256xf32> to vector<1xf32>
    %46 = vector.shape_cast %45 : vector<1xf32> to vector<1x1x1xf32>
    %47 = vector.extract %46[0, 0, 0] : f32 from vector<1x1x1xf32>
    %48 = vector.broadcast %47 : f32 to vector<1x8x128xf32>
    %c0_18 = arith.constant 0 : index
    %c0_19 = arith.constant 0 : index
    %c0_20 = arith.constant 0 : index
    %49 = vector.load %arg3[%c0_18, %c0_19, %c0_20] : memref<1x8x128xf32, #tpu.memory_space<vmem>>, vector<1x8x128xf32>
    tpu.vector_store %arg3[%c0_18, %c0_19, %c0_20], %48 {strides = array<i32>} : memref<1x8x128xf32, #tpu.memory_space<vmem>>, vector<1x8x128xf32>,
    return
  }
  func.func @transform_0(%arg0: i32) -> (i32, i32) {
    %c0_i32 = arith.constant 0 : i32
    %c0_i32_0 = arith.constant 0 : i32
    return %arg0, %c0_i32 : i32, i32
  }
  func.func @transform_1(%arg0: i32) -> (i32, i32) {
    %c0_i32 = arith.constant 0 : i32
    %c0_i32_0 = arith.constant 0 : i32
    return %arg0, %c0_i32 : i32, i32
  }
  func.func @transform_2(%arg0: i32) -> (i32, i32, i32) {
    %c0_i32 = arith.constant 0 : i32
    %c0_i32_0 = arith.constant 0 : i32
    %c0_i32_1 = arith.constant 0 : i32
    return %arg0, %c0_i32, %c0_i32_0 : i32, i32, i32
  }
}

</mosaic_0001>

<llo_original>
// kernel: tpu_custom_call.1
$region0: #{tpu_custom_call.1}
  #allocation0 [shape = 'u32[]', space=smem, size = 0x4, offset = 0x4, fixed_abs, tag = 'smem constant byte address 0x4 - core index']
  #allocation1 [shape = 'u32[144,128]{1,0:T(1,128)}', space=vmem, size = 0x12000, scoped, tag = 'internal scratch']
  %s0 = inlined_call_operand.hbm [shape: f32[2,1024], index: 0, kind: input, shape index: {}]
  %s1 = inlined_call_operand.hbm [shape: f32[2,1024], index: 1, kind: input, shape index: {}]
  %s2 = inlined_call_operand.hbm [shape: f32[1,8,128], index: 2, kind: output, shape index: {}]
  %s3 = sld [smem:[#allocation0]]
  $region26: #{tpu_custom_call.1} parent=0
    _
  %s5 = ssub.s32 1, %s3
  %s6 = scalar_select 0, %s5, %s3
  $region1: #{tpu_custom_call.1} parent=0
    #allocation2 [shape = 'u8[8192]{0}', space=vmem, size = 0x2000, scoped, tag = 'input window, operand 0, single buffered']
    #allocation3 [shape = 's32[1]{0}', space=sflag, size = 0x4, scoped, tag = 'scoped memory for tpu_custom_call.1']
    #allocation4 [shape = 's32[1]{0}', space=sflag, size = 0x4, scoped, tag = 'scoped memory for tpu_custom_call.1']
    #allocation5 [shape = 'u8[8192]{0}', space=vmem, size = 0x2000, scoped, tag = 'input window, operand 1, single buffered']
    #allocation6 [shape = 's32[1]{0}', space=sflag, size = 0x4, scoped, tag = 'scoped memory for tpu_custom_call.1']
    #allocation7 [shape = 'u8[4096]{0}', space=vmem, size = 0x1000, scoped, tag = 'output window, operand 0, single buffered']
    %7 = vsyncpa [#allocation3], 0
    %8 = vsyncpa [#allocation6], 0
    %9 = vsyncpa [#allocation4], 0
    // Predicated region
    $region2: #{tpu_custom_call.1} parent=1 // pred_check
      _
    $region3: #{tpu_custom_call.1} parent=1 // pred_check_branch
      %11 = sbr.rel (0) target = $region5
    $region4: #{tpu_custom_call.1} parent=1 // pred_region
      %s13 = ssub.s32 256, 256
      %14 = vsyncadd [#allocation3], %s13
      %s16 = sshll.u32 [#allocation2], 4
      %s17 = int_to_ptr.vmem [resolvable:$true] %s16
      %19 = dma.hbm_to_vmem [thread:$0]  %s0, 256, %s17, [#allocation3]
    $region5: #{tpu_custom_call.1} parent=1 // pred_fallthru
      _
    // Predicated region
    $region6: #{tpu_custom_call.1} parent=1 // pred_check
      _
    $region7: #{tpu_custom_call.1} parent=1 // pred_check_branch
      %21 = sbr.rel (0) target = $region9
    $region8: #{tpu_custom_call.1} parent=1 // pred_region
      %s23 = ssub.s32 256, 256
      %24 = vsyncadd [#allocation6], %s23
      %s26 = sshll.u32 [#allocation5], 4
      %s27 = int_to_ptr.vmem [resolvable:$true] %s26
      %29 = dma.hbm_to_vmem [thread:$0]  %s1, 256, %s27, [#allocation6]
    $region9: #{tpu_custom_call.1} parent=1 // pred_fallthru
      _
    // Predicated region
    $region10: #{tpu_custom_call.1} parent=1 // pred_check
      _
    $region11: #{tpu_custom_call.1} parent=1 // pred_check_branch
      %31 = sbr.rel (0) target = $region13
    $region12: #{tpu_custom_call.1} parent=1 // pred_region
      %32 = dma.done [#allocation3], 256
    $region13: #{tpu_custom_call.1} parent=1 // pred_fallthru
      _
    // Predicated region
    $region14: #{tpu_custom_call.1} parent=1 // pred_check
      _
    $region15: #{tpu_custom_call.1} parent=1 // pred_check_branch
      %34 = sbr.rel (0) target = $region17
    $region16: #{tpu_custom_call.1} parent=1 // pred_region
      %35 = dma.done [#allocation6], 256
    $region17: #{tpu_custom_call.1} parent=1 // pred_fallthru
      _
    %v36 = vld [vmem:[#allocation2] sm:$0xf]
    %v37 = vld [vmem:[#allocation5] sm:$0xf]
    %v38 = vmul.f32 %v36, %v36
    %v39 = vadd.f32 %v38, 0.0
    %v40 = vmul.f32 %v37, %v37
    %v41 = vadd.f32 %v40, 0.0
    %v42 = vld [vmem:[#allocation2 + $0x4] sm:$0xf]
    %v43 = vld [vmem:[#allocation5 + $0x4] sm:$0xf]
    %v44 = vmul.f32 %v42, %v42
    %v45 = vadd.f32 %v39, %v44
    %v46 = vmul.f32 %v43, %v43
    %v47 = vadd.f32 %v41, %v46
    %v48 = vld [vmem:[#allocation2 + $0x8] sm:$0xf]
    %v49 = vld [vmem:[#allocation5 + $0x8] sm:$0xf]
    %v50 = vmul.f32 %v48, %v48
    %v51 = vadd.f32 %v45, %v50
    %v52 = vmul.f32 %v49, %v49
    %v53 = vadd.f32 %v47, %v52
    %v54 = vld [vmem:[#allocation2 + $0xc] sm:$0xf]
    %v55 = vld [vmem:[#allocation5 + $0xc] sm:$0xf]
    %v56 = vmul.f32 %v54, %v54
    %v57 = vadd.f32 %v51, %v56
    %v58 = vmul.f32 %v55, %v55
    %v59 = vadd.f32 %v53, %v58
    %v60 = vmul.f32 %v57, %v57
    %v63 = vunpack.c.l.s4 1983009808
    %v64 = vunpack.c.0.s8 %v63
    %v65 = vlaneseq
    %v66 = vshrl.u32 %v65, 7
    %v67 = vsub.s32 %v64, %v66
    %v68 = vrot.slane %v60, %v67
    %v69 = vcombine.high %v68, %v68
    %vm72 = vcmask 1041408
    %v73 = vsel %vm72, %v68, 0.0
    %v74 = vsel %vm72, %v69, 0.0
    %v75 = vadd.f32 %v73, %v74
    %76 = vadd.xlane.f32.xlu0 %v75
    %v77 = vpop.xlane.xlu0 %76
    %v78 = vmul.f32 %v59, %v59
    %v81 = vunpack.c.l.s4 1983009808
    %v82 = vunpack.c.0.s8 %v81
    %v83 = vlaneseq
    %v84 = vshrl.u32 %v83, 7
    %v85 = vsub.s32 %v82, %v84
    %v86 = vrot.slane %v78, %v85
    %v87 = vcombine.high %v86, %v86
    %v90 = vsel %vm72, %v86, 0.0
    %v91 = vsel %vm72, %v87, 0.0
    %v92 = vadd.f32 %v90, %v91
    %93 = vadd.xlane.f32.xlu0 %v92
    %v94 = vpop.xlane.xlu0 %93
    %v95 = vmax.f32 %v77, 1.6e-23
    %v96 = vrsqrt.pop %v95
    %v97 = vmax.f32 %v94, 1.6e-23
    %v98 = vrsqrt.pop %v97
    %v101 = vunpack.c.l.s4 269488144
    %v102 = vunpack.c.0.s8 %v101
    %v103 = vlaneseq
    %v104 = vshrl.u32 %v103, 7
    %v105 = vsub.s32 %v102, %v104
    %v106 = vrot.slane %v96, %v105
    %v108 = vmul.f32 %v57, %v106
    %v111 = vunpack.c.l.s4 269488144
    %v112 = vunpack.c.0.s8 %v111
    %v113 = vlaneseq
    %v114 = vshrl.u32 %v113, 7
    %v115 = vsub.s32 %v112, %v114
    %v116 = vrot.slane %v98, %v115
    %v118 = vmul.f32 %v59, %v116
    %v119 = vsub.f32 %v108, %v118
    %v120 = vmul.f32 %v119, %v119
    %v123 = vunpack.c.l.s4 1983009808
    %v124 = vunpack.c.0.s8 %v123
    %v125 = vlaneseq
    %v126 = vshrl.u32 %v125, 7
    %v127 = vsub.s32 %v124, %v126
    %v128 = vrot.slane %v120, %v127
    %v129 = vcombine.high %v128, %v128
    %v132 = vsel %vm72, %v128, 0.0
    %v133 = vsel %vm72, %v129, 0.0
    %v134 = vadd.f32 %v132, %v133
    %135 = vadd.xlane.f32.xlu0 %v134
    %v136 = vpop.xlane.xlu0 %135
    %v137 = vrot.slane %v136, 4
    %v138 = vadd.f32 %v136, %v137
    %v139 = vrot.slane %v138, 2
    %v140 = vadd.f32 %v138, %v139
    %v141 = vrot.slane %v140, 1
    %v142 = vadd.f32 %v140, %v141
    %s143 = vtos %v142
    %v144 = vstv %s143
    %145 = vst [vmem:[#allocation7] sm:$0xff] %v144
    // Predicated region
    $region18: #{tpu_custom_call.1} parent=1 // pred_check
      _
    $region19: #{tpu_custom_call.1} parent=1 // pred_check_branch
      %147 = sbr.rel (0) target = $region21
    $region20: #{tpu_custom_call.1} parent=1 // pred_region
      %s149 = ssub.s32 128, 128
      %150 = vsyncadd [#allocation4], %s149
      %s152 = sshll.u32 [#allocation7], 4
      %s153 = int_to_ptr.vmem [resolvable:$true] %s152
      %155 = dma.vmem_to_hbm [thread:$0]  %s153, 128, %s2, [#allocation4]
    $region21: #{tpu_custom_call.1} parent=1 // pred_fallthru
      _
    // Predicated region
    $region22: #{tpu_custom_call.1} parent=1 // pred_check
      _
    $region23: #{tpu_custom_call.1} parent=1 // pred_check_branch
      %157 = sbr.rel (0) target = $region25
    $region24: #{tpu_custom_call.1} parent=1 // pred_region
      %158 = dma.done [#allocation4], 128
    $region25: #{tpu_custom_call.1} parent=1 // pred_fallthru
      _
    %159 = vsyncpa [#allocation3], 1
    %160 = vsyncpa [#allocation6], 1
    %161 = vsyncpa [#allocation4], 1

</llo_original>
